<compile_context>
chip_gen: v5e
topology: v5e:2x2
jax: 0.10.0
libtpu: 0.0.40
codegen_flags: <defaults>
</compile_context>

<pallas_src>
import jax
import jax.numpy as jnp
import numpy as np
from jax.experimental import pallas as pl
from jax.experimental.pallas import tpu as pltpu


def _round_up(x, m):
    return ((x + m - 1) // m) * m


def _cdiv(a, b):
    return (a + b - 1) // b


def _default_compute_dtype():
    """bf16 MXU inputs on v6e/v7x (native bf16 VPU + wide MXU); f32 elsewhere (v5e & older)."""
    try:
        kind = jax.devices()[0].device_kind.lower()
    except Exception:
        return jnp.float32
    if "v6" in kind or "v7" in kind or "7x" in kind:
        return jnp.bfloat16
    return jnp.float32


def _choose_tiling(S, per_lane_bytes, *, target_tile, tile_budget_bytes=16 << 20):
    """Pick (tile, grid, S_pad): lane tile (multiple of 128), #grid steps, padded spatial size."""
    S128 = _round_up(S, 128)
    max_tile = min(target_tile, tile_budget_bytes // max(per_lane_bytes, 1))
    max_tile = max(128, (max_tile // 128) * 128)
    if S128 <= 2048:
        # Small problem: one big block; launch/step overhead dominates anyway.
        tile, grid = S128, 1
    else:
        # Keep >= 2 grid steps so megacore (v7x) can shard the "parallel" axis.
        grid = max(2, _cdiv(S128, max_tile))
        tile = _round_up(_cdiv(S128, grid), 128)
        grid = _cdiv(S128, tile)
    return tile, grid, grid * tile


def _choose_chunk(tile, itemsize):
    """In-kernel lane chunk: bounds vreg live ranges while the DMA tile stays large."""
    preferred = 512 if itemsize <= 2 else 256
    for c in (preferred, 256, 128):
        if c <= tile and tile % c == 0:
            return c
    return 128


def _make_kernel(num_mid_layers, chunk, num_chunks):
    """refs: x(C,tile), W0(G+1,C), b0(G+1,1), [W_mid(G+1,G+1)]*, wd(G+1,1), o(1,tile)."""

    def kernel(*refs):
        x_ref, w0_ref, b0_ref = refs[0], refs[1], refs[2]
        o_ref = refs[-1]
        wd_ref = refs[-2]
        mid_refs = refs[3:-2]
        act_dtype = x_ref.dtype

        # Hoist the (tiny) parameter loads out of the chunk loop.
        w0 = w0_ref[...]                     # (G+1, C)   zero last row
        b0 = b0_ref[...]                     # (G+1, 1)   f32, last entry == 1.0
        ws = [r[...] for r in mid_refs]      # (G+1, G+1) bias folded, ones-row propagated
        wd = wd_ref[...]                     # (G+1, 1)   f32, deconv weights + bias column

        def process(start):
            xb = x_ref[:, pl.ds(start, chunk)]                                  # (C, chunk)
            # Layer 0: W0 @ x + b0; the augmented row becomes exactly 1.0 and survives ReLU.
            h = jnp.dot(w0, xb, preferred_element_type=jnp.float32) + b0
            h = jnp.maximum(h, 0.0).astype(act_dtype)
            # Later layers: bias folded into the matmul (K-pad is free on the MXU).
            for w in ws:
                h = jnp.dot(w, h, preferred_element_type=jnp.float32)
                h = jnp.maximum(h, 0.0).astype(act_dtype)
            # Deconv (1 output channel): VPU multiply + sublane (XLU) reduction instead of an
            # M=1 MXU matmul; the bias rides along via the ones row.
            out = jnp.sum(wd * h.astype(jnp.float32), axis=0, keepdims=True)    # (1, chunk) f32
            o_ref[:, pl.ds(start, chunk)] = out.astype(o_ref.dtype)

        if num_chunks == 1:
            process(0)
        else:
            def body(c, carry):
                process(pl.multiple_of(c * chunk, 128))
                return carry
            jax.lax.fori_loop(0, num_chunks, body, 0, unroll=num_chunks <= 8)

    return kernel


def _prepare_params(params, compute_dtype):
    """Flatten & augment parameters (bias folding / ones-row propagation)."""
    conv_w, conv_b = params["conv_w"], params["conv_b"]
    G = conv_w[0].shape[0]

    w0 = conv_w[0][:, :, 0]                                                       # (G, C)
    w0_aug = jnp.concatenate([w0, jnp.zeros((1, w0.shape[1]), w0.dtype)], axis=0)  # (G+1, C)
    b0_aug = jnp.concatenate([conv_b[0], jnp.ones((1,), jnp.float32)]).reshape(-1, 1)

    flat = [w0_aug.astype(compute_dtype), b0_aug.astype(jnp.float32)]
    for w, b in zip(conv_w[1:], conv_b[1:]):
        wa = jnp.zeros((G + 1, G + 1), jnp.float32)
        wa = wa.at[:G, :G].set(w[:, :, 0])
        wa = wa.at[:G, G].set(b)           # folded bias (multiplies the ones row)
        wa = wa.at[G, G].set(1.0)          # propagate the ones row through this layer
        flat.append(wa.astype(compute_dtype))

    wd = jnp.concatenate([params["deconv_w"][:, 0, 0], params["deconv_b"]]).reshape(-1, 1)
    flat.append(wd.astype(jnp.float32))    # (G+1, 1): deconv weights + bias, f32 (VPU path)
    return flat


def conv_context_distributions_forward(
    x, params, *, N, L, C,
    tile_s=None, compute_dtype=None, out_dtype=jnp.float32, target_tile=16384,
):
    """Pallas implementation of ConvContextDistributions.forward.

    x      : array with C * L**N elements (e.g. shape (1, C, L, L) for N=2), NCHW-style.
    params : dict with 'conv_w' (list of (out,in,1)), 'conv_b' (list of (out,)),
             'deconv_w' ((G,1,1)), 'deconv_b' ((1,)).
    compute_dtype : MXU input dtype. None -> bf16 on v6e/v7x, f32 elsewhere. Pass jnp.float32
                    explicitly for f32 parity with the PyTorch module; accumulation is always f32.
    Returns array of shape (L,)*N (dtype out_dtype), matching the PyTorch module.
    """
    S = L ** N
    num_layers = len(params["conv_w"])
    G = params["conv_w"][0].shape[0]
    if compute_dtype is None:
        compute_dtype = _default_compute_dtype()
    x_itemsize = jnp.dtype(compute_dtype).itemsize
    out_itemsize = jnp.dtype(out_dtype).itemsize

    # --- glue: reshape exactly like torch `x.view(-1, C, L**N)` ---
    x2 = jnp.reshape(x, (-1, C, S))
    if x2.shape[0] != 1:
        # The module's final `x.view(L, ..., L)` only has L**N elements => batch must be 1.
        raise ValueError("final view to (L,)*N requires batch == 1")
    xk = x2[0].astype(compute_dtype)       # (C, S): channels on sublanes, spatial on lanes

    # --- tiling: big lane tiles, >=2 grid steps for large S, VMEM-budget capped ---
    per_lane_bytes = 2 * C * x_itemsize + 2 * out_itemsize   # double-buffered x + out tiles
    if tile_s is not None:
        tile = max(128, (int(tile_s) // 128) * 128)
        grid = _cdiv(_round_up(S, 128), tile)
        S_pad = grid * tile
    else:
        tile, grid, S_pad = _choose_tiling(S, per_lane_bytes, target_tile=target_tile)
    if S_pad != S:
        # 1x1 convs are per-position: zero-padding extra lanes is exact, sliced off afterwards.
        xk = jnp.pad(xk, ((0, 0), (0, S_pad - S)))
    chunk = _choose_chunk(tile, x_itemsize)
    num_chunks = tile // chunk

    flat_params = _prepare_params(params, compute_dtype)

    # --- VMEM accounting: stay inside the scoped default; raise the limit only when needed ---
    param_bytes = 2 * sum(int(p.size) * p.dtype.itemsize for p in flat_params)
    est_bytes = (2 * C * tile * x_itemsize + 2 * tile * out_itemsize + param_bytes
                 + 6 * (G + 1) * chunk * 4)                  # rough in-kernel f32 temporaries
    cp_kwargs = dict(dimension_semantics=("parallel",))
    if est_bytes > 24 * (1 << 20):
        cp_kwargs["vmem_limit_bytes"] = int(min(60 * (1 << 20), 2 * est_bytes))

    kernel = _make_kernel(num_layers - 1, chunk, num_chunks)

    def _call(single_buffer_params):
        def _param_spec(shape):
            if single_buffer_params:
                # Constant index map -> one VMEM copy is enough; skip double-buffering.
                return pl.BlockSpec(shape, lambda i: (0, 0), pipeline_mode=pl.Buffered(1))
            return pl.BlockSpec(shape, lambda i: (0, 0))

        in_specs = [pl.BlockSpec((C, tile), lambda i: (0, i))]
        in_specs += [_param_spec(p.shape) for p in flat_params]
        out_spec = pl.BlockSpec((1, tile), lambda i: (0, i))   # lane-dense output stores

        return pl.pallas_call(
            kernel,
            out_shape=jax.ShapeDtypeStruct((1, S_pad), out_dtype),
            grid_spec=pltpu.PrefetchScalarGridSpec(
                num_scalar_prefetch=0,
                grid=(grid,),
                in_specs=in_specs,
                out_specs=out_spec,
            ),
            compiler_params=pltpu.CompilerParams(**cp_kwargs),
        )(xk, *flat_params)

    try:
        out = _call(True)
    except Exception:
        # pipeline_mode=pl.Buffered(1) unsupported by this jax version -> default buffering.
        out = _call(False)

    # --- glue: final `x.view(L, L, ..., L)` (drop spatial padding first) ---
    return jnp.reshape(out[0, :S], tuple(L for _ in range(N)))


def init_params(key, *, N, L, C, num_conv_layers, G):
    """Deterministic synthetic parameters matching the nn.Module's shapes."""
    keys = jax.random.split(key, 2 * (num_conv_layers + 1))
    conv_w, conv_b = [], []
    in_ch = C
    ki = 0
    for _ in range(num_conv_layers):
        conv_w.append(0.1 * jax.random.normal(keys[ki], (G, in_ch, 1), jnp.float32)); ki += 1
        conv_b.append(0.1 * jax.random.normal(keys[ki], (G,), jnp.float32)); ki += 1
        in_ch = G
    deconv_w = 0.1 * jax.random.normal(keys[ki], (G, 1, 1), jnp.float32); ki += 1
    deconv_b = 0.1 * jax.random.normal(keys[ki], (1,), jnp.float32)
    return {"conv_w": conv_w, "conv_b": conv_b, "deconv_w": deconv_w, "deconv_b": deconv_b}


def _reference_forward(x, params, *, N, L, C):
    """Pure-JAX reference (mirrors the PyTorch forward) for correctness checks."""
    hi = jax.lax.Precision.HIGHEST
    S = L ** N
    h = jnp.reshape(x, (-1, C, S)).astype(jnp.float32)  # (1, C, S)
    for w, b in zip(params["conv_w"], params["conv_b"]):
        h = jnp.einsum("oc,bcs->bos", w[:, :, 0], h, precision=hi) + b[None, :, None]
        h = jnp.maximum(h, 0.0)
    h = (jnp.einsum("io,bis->bos", params["deconv_w"][:, :, 0], h, precision=hi)
         + params["deconv_b"][None, :, None])
    return jnp.reshape(h, tuple(L for _ in range(N)))


if __name__ == "__main__":
    key = jax.random.PRNGKey(0)
    k_x, k_p, k_x2, k_p2 = jax.random.split(key, 4)

    # --- Case 1: the shipped small configuration (single lane tile, no padding) ---
    N, L, C, num_conv_layers, G = 2, 16, 4, 2, 32
    x = jax.random.normal(k_x, (1, C, L, L), jnp.float32)     # NCHW, C * L**N elements
    params = init_params(k_p, N=N, L=L, C=C, num_conv_layers=num_conv_layers, G=G)
    ref = jax.block_until_ready(_reference_forward(x, params, N=N, L=L, C=C))

    # 1a) explicit f32 compute path: close match against the pure-JAX reference.
    out_f32 = jax.block_until_ready(
        conv_context_distributions_forward(x, params, N=N, L=L, C=C, compute_dtype=jnp.float32))
    if not np.allclose(np.asarray(out_f32), np.asarray(ref), rtol=1e-4, atol=1e-4):
        raise AssertionError("Pallas kernel (f32) output mismatch vs reference")

    # 1b) generation-aware default dtype (bf16 MXU inputs on v6e/v7x, f32 elsewhere).
    out_auto = jax.block_until_ready(
        conv_context_distributions_forward(x, params, N=N, L=L, C=C))
    if not np.allclose(np.asarray(out_auto), np.asarray(ref), rtol=3e-2, atol=3e-2):
        raise AssertionError("Pallas kernel (auto dtype) output mismatch vs reference")

    # --- Case 2: non-128-divisible spatial size -> exercises padding, 2 "parallel" grid
    #             steps (v7x megacore), and the in-kernel chunk loop ---
    N2, L2 = 2, 50                      # S = 2500 -> padded to 2560, grid = 2, tile = 1280
    x2 = jax.random.normal(k_x2, (1, C, L2, L2), jnp.float32)
    params2 = init_params(k_p2, N=N2, L=L2, C=C, num_conv_layers=num_conv_layers, G=G)
    ref2 = jax.block_until_ready(_reference_forward(x2, params2, N=N2, L=L2, C=C))
    out2 = jax.block_until_ready(
        conv_context_distributions_forward(x2, params2, N=N2, L=L2, C=C,
                                           compute_dtype=jnp.float32))
    if not np.allclose(np.asarray(out2), np.asarray(ref2), rtol=1e-4, atol=1e-4):
        raise AssertionError("Pallas kernel (tiled/padded) output mismatch vs reference")

    print("KERNEL_OK")
</pallas_src>

<mosaic_0001>
module attributes {stable_mosaic.version = 11 : i64} {
  func.func @kernel(%arg0: i32, %arg1: memref<4x256xf32, #tpu.memory_space<vmem>>, %arg2: memref<33x4xf32, #tpu.memory_space<vmem>>, %arg3: memref<33x1xf32, #tpu.memory_space<vmem>>, %arg4: memref<33x33xf32, #tpu.memory_space<vmem>>, %arg5: memref<33x1xf32, #tpu.memory_space<vmem>>, %arg6: memref<1x256xf32, #tpu.memory_space<vmem>>) attributes {dimension_semantics = [#tpu.dimension_semantics<parallel>], iteration_bounds = array<i64: 1>, scalar_prefetch = 0 : i64, scratch_operands = 0 : i64, tpu.core_type = #tpu.core_type<tc>, window_params = [{transform_indices = @transform_0, window_bounds = array<i64: 4, 256>}, {pipeline_mode = #tpu.pipeline_mode<synchronous>, transform_indices = @transform_1, window_bounds = array<i64: 33, 4>}, {pipeline_mode = #tpu.pipeline_mode<synchronous>, transform_indices = @transform_2, window_bounds = array<i64: 33, 1>}, {pipeline_mode = #tpu.pipeline_mode<synchronous>, transform_indices = @transform_3, window_bounds = array<i64: 33, 33>}, {pipeline_mode = #tpu.pipeline_mode<synchronous>, transform_indices = @transform_4, window_bounds = array<i64: 33, 1>}, {transform_indices = @transform_5, window_bounds = array<i64: 1, 256>}]} {
    %c0 = arith.constant 0 : index
    %c0_0 = arith.constant 0 : index
    %0 = vector.load %arg2[%c0, %c0_0] : memref<33x4xf32, #tpu.memory_space<vmem>>, vector<33x4xf32>
    %c0_1 = arith.constant 0 : index
    %c0_2 = arith.constant 0 : index
    %1 = vector.load %arg3[%c0_1, %c0_2] : memref<33x1xf32, #tpu.memory_space<vmem>>, vector<33x1xf32>
    %c0_3 = arith.constant 0 : index
    %c0_4 = arith.constant 0 : index
    %2 = vector.load %arg4[%c0_3, %c0_4] : memref<33x33xf32, #tpu.memory_space<vmem>>, vector<33x33xf32>
    %c0_5 = arith.constant 0 : index
    %c0_6 = arith.constant 0 : index
    %3 = vector.load %arg5[%c0_5, %c0_6] : memref<33x1xf32, #tpu.memory_space<vmem>>, vector<33x1xf32>
    %c0_7 = arith.constant 0 : index
    %c0_8 = arith.constant 0 : index
    %4 = vector.load %arg1[%c0_7, %c0_8] : memref<4x256xf32, #tpu.memory_space<vmem>>, vector<4x256xf32>
    %cst = arith.constant dense<0.000000e+00> : vector<33x256xf32>
    %5 = tpu.matmul %0, %4, %cst {dimension_numbers = #tpu.dot_dimension_numbers<[1], [0], [0], [1], [0, 0, 1, 1], [], []>} : vector<33x4xf32>, vector<4x256xf32>, vector<33x256xf32> -> vector<33x256xf32>
    %6 = vector.broadcast %1 : vector<33x1xf32> to vector<33x256xf32>
    %7 = arith.addf %5, %6 : vector<33x256xf32>
    %cst_9 = arith.constant 0.000000e+00 : f32
    %8 = vector.broadcast %cst_9 : f32 to vector<33x256xf32>
    %9 = arith.maximumf %7, %8 : vector<33x256xf32>
    %cst_10 = arith.constant dense<0.000000e+00> : vector<33x256xf32>
    %10 = tpu.matmul %2, %9, %cst_10 {dimension_numbers = #tpu.dot_dimension_numbers<[1], [0], [0], [1], [0, 0, 1, 1], [], []>} : vector<33x33xf32>, vector<33x256xf32>, vector<33x256xf32> -> vector<33x256xf32>
    %cst_11 = arith.constant 0.000000e+00 : f32
    %11 = vector.broadcast %cst_11 : f32 to vector<33x256xf32>
    %12 = arith.maximumf %10, %11 : vector<33x256xf32>
    %13 = vector.broadcast %3 : vector<33x1xf32> to vector<33x256xf32>
    %14 = arith.mulf %13, %12 : vector<33x256xf32>
    %cst_12 = arith.constant dense<0.000000e+00> : vector<256xf32>
    %15 = vector.multi_reduction <add>, %14, %cst_12 [0] : vector<33x256xf32> to vector<256xf32>
    %16 = vector.shape_cast %15 : vector<256xf32> to vector<1x256xf32>
    %c0_13 = arith.constant 0 : index
    %c0_14 = arith.constant 0 : index
    %17 = vector.load %arg6[%c0_13, %c0_14] : memref<1x256xf32, #tpu.memory_space<vmem>>, vector<1x256xf32>
    tpu.vector_store %arg6[%c0_13, %c0_14], %16 {strides = array<i32>} : memref<1x256xf32, #tpu.memory_space<vmem>>, vector<1x256xf32>,
    return
  }
  func.func @transform_0(%arg0: i32) -> (i32, i32) {
    %c0_i32 = arith.constant 0 : i32
    %c0_i32_0 = arith.constant 0 : i32
    return %c0_i32, %arg0 : i32, i32
  }
  func.func @transform_1(%arg0: i32) -> (i32, i32) {
    %c0_i32 = arith.constant 0 : i32
    %c0_i32_0 = arith.constant 0 : i32
    %c0_i32_1 = arith.constant 0 : i32
    return %c0_i32, %c0_i32_0 : i32, i32
  }
  func.func @transform_2(%arg0: i32) -> (i32, i32) {
    %c0_i32 = arith.constant 0 : i32
    %c0_i32_0 = arith.constant 0 : i32
    %c0_i32_1 = arith.constant 0 : i32
    return %c0_i32, %c0_i32_0 : i32, i32
  }
  func.func @transform_3(%arg0: i32) -> (i32, i32) {
    %c0_i32 = arith.constant 0 : i32
    %c0_i32_0 = arith.constant 0 : i32
    %c0_i32_1 = arith.constant 0 : i32
    return %c0_i32, %c0_i32_0 : i32, i32
  }
  func.func @transform_4(%arg0: i32) -> (i32, i32) {
    %c0_i32 = arith.constant 0 : i32
    %c0_i32_0 = arith.constant 0 : i32
    %c0_i32_1 = arith.constant 0 : i32
    return %c0_i32, %c0_i32_0 : i32, i32
  }
  func.func @transform_5(%arg0: i32) -> (i32, i32) {
    %c0_i32 = arith.constant 0 : i32
    %c0_i32_0 = arith.constant 0 : i32
    return %c0_i32, %arg0 : i32, i32
  }
}

module attributes {stable_mosaic.version = 11 : i64} {
  func.func @kernel(%arg0: i32, %arg1: memref<4x256xf32, #tpu.memory_space<vmem>>, %arg2: memref<33x4xf32, #tpu.memory_space<vmem>>, %arg3: memref<33x1xf32, #tpu.memory_space<vmem>>, %arg4: memref<33x33xf32, #tpu.memory_space<vmem>>, %arg5: memref<33x1xf32, #tpu.memory_space<vmem>>, %arg6: memref<1x256xf32, #tpu.memory_space<vmem>>) attributes {dimension_semantics = [#tpu.dimension_semantics<parallel>], iteration_bounds = array<i64: 1>, scalar_prefetch = 0 : i64, scratch_operands = 0 : i64, tpu.core_type = #tpu.core_type<tc>, window_params = [{transform_indices = @transform_0, window_bounds = array<i64: 4, 256>}, {pipeline_mode = #tpu.pipeline_mode<synchronous>, transform_indices = @transform_1, window_bounds = array<i64: 33, 4>}, {pipeline_mode = #tpu.pipeline_mode<synchronous>, transform_indices = @transform_2, window_bounds = array<i64: 33, 1>}, {pipeline_mode = #tpu.pipeline_mode<synchronous>, transform_indices = @transform_3, window_bounds = array<i64: 33, 33>}, {pipeline_mode = #tpu.pipeline_mode<synchronous>, transform_indices = @transform_4, window_bounds = array<i64: 33, 1>}, {transform_indices = @transform_5, window_bounds = array<i64: 1, 256>}]} {
    %c0 = arith.constant 0 : index
    %c0_0 = arith.constant 0 : index
    %0 = vector.load %arg2[%c0, %c0_0] : memref<33x4xf32, #tpu.memory_space<vmem>>, vector<33x4xf32>
    %c0_1 = arith.constant 0 : index
    %c0_2 = arith.constant 0 : index
    %1 = vector.load %arg3[%c0_1, %c0_2] : memref<33x1xf32, #tpu.memory_space<vmem>>, vector<33x1xf32>
    %c0_3 = arith.constant 0 : index
    %c0_4 = arith.constant 0 : index
    %2 = vector.load %arg4[%c0_3, %c0_4] : memref<33x33xf32, #tpu.memory_space<vmem>>, vector<33x33xf32>
    %c0_5 = arith.constant 0 : index
    %c0_6 = arith.constant 0 : index
    %3 = vector.load %arg5[%c0_5, %c0_6] : memref<33x1xf32, #tpu.memory_space<vmem>>, vector<33x1xf32>
    %c0_7 = arith.constant 0 : index
    %c0_8 = arith.constant 0 : index
    %4 = vector.load %arg1[%c0_7, %c0_8] : memref<4x256xf32, #tpu.memory_space<vmem>>, vector<4x256xf32>
    %cst = arith.constant dense<0.000000e+00> : vector<33x256xf32>
    %5 = tpu.matmul %0, %4, %cst {dimension_numbers = #tpu.dot_dimension_numbers<[1], [0], [0], [1], [0, 0, 1, 1], [], []>} : vector<33x4xf32>, vector<4x256xf32>, vector<33x256xf32> -> vector<33x256xf32>
    %6 = vector.broadcast %1 : vector<33x1xf32> to vector<33x256xf32>
    %7 = arith.addf %5, %6 : vector<33x256xf32>
    %cst_9 = arith.constant 0.000000e+00 : f32
    %8 = vector.broadcast %cst_9 : f32 to vector<33x256xf32>
    %9 = arith.maximumf %7, %8 : vector<33x256xf32>
    %cst_10 = arith.constant dense<0.000000e+00> : vector<33x256xf32>
    %10 = tpu.matmul %2, %9, %cst_10 {dimension_numbers = #tpu.dot_dimension_numbers<[1], [0], [0], [1], [0, 0, 1, 1], [], []>} : vector<33x33xf32>, vector<33x256xf32>, vector<33x256xf32> -> vector<33x256xf32>
    %cst_11 = arith.constant 0.000000e+00 : f32
    %11 = vector.broadcast %cst_11 : f32 to vector<33x256xf32>
    %12 = arith.maximumf %10, %11 : vector<33x256xf32>
    %13 = vector.broadcast %3 : vector<33x1xf32> to vector<33x256xf32>
    %14 = arith.mulf %13, %12 : vector<33x256xf32>
    %cst_12 = arith.constant dense<0.000000e+00> : vector<256xf32>
    %15 = vector.multi_reduction <add>, %14, %cst_12 [0] : vector<33x256xf32> to vector<256xf32>
    %16 = vector.shape_cast %15 : vector<256xf32> to vector<1x256xf32>
    %c0_13 = arith.constant 0 : index
    %c0_14 = arith.constant 0 : index
    %17 = vector.load %arg6[%c0_13, %c0_14] : memref<1x256xf32, #tpu.memory_space<vmem>>, vector<1x256xf32>
    tpu.vector_store %arg6[%c0_13, %c0_14], %16 {strides = array<i32>} : memref<1x256xf32, #tpu.memory_space<vmem>>, vector<1x256xf32>,
    return
  }
  func.func @transform_0(%arg0: i32) -> (i32, i32) {
    %c0_i32 = arith.constant 0 : i32
    %c0_i32_0 = arith.constant 0 : i32
    return %c0_i32, %arg0 : i32, i32
  }
  func.func @transform_1(%arg0: i32) -> (i32, i32) {
    %c0_i32 = arith.constant 0 : i32
    %c0_i32_0 = arith.constant 0 : i32
    %c0_i32_1 = arith.constant 0 : i32
    return %c0_i32, %c0_i32_0 : i32, i32
  }
  func.func @transform_2(%arg0: i32) -> (i32, i32) {
    %c0_i32 = arith.constant 0 : i32
    %c0_i32_0 = arith.constant 0 : i32
    %c0_i32_1 = arith.constant 0 : i32
    return %c0_i32, %c0_i32_0 : i32, i32
  }
  func.func @transform_3(%arg0: i32) -> (i32, i32) {
    %c0_i32 = arith.constant 0 : i32
    %c0_i32_0 = arith.constant 0 : i32
    %c0_i32_1 = arith.constant 0 : i32
    return %c0_i32, %c0_i32_0 : i32, i32
  }
  func.func @transform_4(%arg0: i32) -> (i32, i32) {
    %c0_i32 = arith.constant 0 : i32
    %c0_i32_0 = arith.constant 0 : i32
    %c0_i32_1 = arith.constant 0 : i32
    return %c0_i32, %c0_i32_0 : i32, i32
  }
  func.func @transform_5(%arg0: i32) -> (i32, i32) {
    %c0_i32 = arith.constant 0 : i32
    %c0_i32_0 = arith.constant 0 : i32
    return %c0_i32, %arg0 : i32, i32
  }
}

</mosaic_0001>

<llo_original>
// kernel: tpu_custom_call.1
$region0: #{tpu_custom_call.1}
  #allocation0 [shape = 'u32[]', space=smem, size = 0x4, offset = 0x4, fixed_abs, tag = 'smem constant byte address 0x4 - core index']
  #allocation1 [shape = 'u32[72,128]{1,0:T(1,128)}', space=vmem, size = 0x9000, scoped, tag = 'internal scratch']
  %s0 = inlined_call_operand.vmem [shape: f32[4,256], index: 0, kind: input, shape index: {}]
  %s1 = inlined_call_operand.vmem [shape: f32[33,4], index: 1, kind: input, shape index: {}]
  %s2 = inlined_call_operand.vmem [shape: f32[33,1], index: 2, kind: input, shape index: {}]
  %s3 = inlined_call_operand.vmem [shape: f32[33,33], index: 3, kind: input, shape index: {}]
  %s4 = inlined_call_operand.vmem [shape: f32[33,1], index: 4, kind: input, shape index: {}]
  %s5 = inlined_call_operand.hbm [shape: f32[1,256], index: 5, kind: output, shape index: {}]
  %s6 = sld [smem:[#allocation0]]
  $region30: #{tpu_custom_call.1} parent=0
    _
  %s8 = ssub.s32 1, %s6
  %s9 = scalar_select 0, %s8, %s6
  $region1: #{tpu_custom_call.1} parent=0
    #allocation2 [shape = 'u8[1024]{0}', space=vmem, size = 0x400, scoped, tag = 'output window, operand 0, single buffered']
    #allocation3 [shape = 's32[1]{0}', space=sflag, size = 0x4, scoped, tag = 'scoped memory for tpu_custom_call.1']
    %10 = vsyncpa [#allocation3], 0
    // Predicated region
    $region2: #{tpu_custom_call.1} parent=1 // pred_check
      _
    $region3: #{tpu_custom_call.1} parent=1 // pred_check_branch
      %12 = sbr.rel (0) target = $region5
    $region4: #{tpu_custom_call.1} parent=1 // pred_region
      _
    $region5: #{tpu_custom_call.1} parent=1 // pred_fallthru
      _
    // Predicated region
    $region6: #{tpu_custom_call.1} parent=1 // pred_check
      _
    $region7: #{tpu_custom_call.1} parent=1 // pred_check_branch
      %14 = sbr.rel (0) target = $region9
    $region8: #{tpu_custom_call.1} parent=1 // pred_region
      _
    $region9: #{tpu_custom_call.1} parent=1 // pred_fallthru
      _
    // Predicated region
    $region10: #{tpu_custom_call.1} parent=1 // pred_check
      _
    $region11: #{tpu_custom_call.1} parent=1 // pred_check_branch
      %16 = sbr.rel (0) target = $region13
    $region12: #{tpu_custom_call.1} parent=1 // pred_region
      _
    $region13: #{tpu_custom_call.1} parent=1 // pred_fallthru
      _
    // Predicated region
    $region14: #{tpu_custom_call.1} parent=1 // pred_check
      _
    $region15: #{tpu_custom_call.1} parent=1 // pred_check_branch
      %18 = sbr.rel (0) target = $region17
    $region16: #{tpu_custom_call.1} parent=1 // pred_region
      _
    $region17: #{tpu_custom_call.1} parent=1 // pred_fallthru
      _
    // Predicated region
    $region18: #{tpu_custom_call.1} parent=1 // pred_check
      _
    $region19: #{tpu_custom_call.1} parent=1 // pred_check_branch
      %20 = sbr.rel (0) target = $region21
    $region20: #{tpu_custom_call.1} parent=1 // pred_region
      _
    $region21: #{tpu_custom_call.1} parent=1 // pred_fallthru
      _
    %v21 = vld [vmem:[%s1] sm:$0xff]
    %v22 = vld [vmem:[%s1 + $0x8] sm:$0xff]
    %v23 = vld [vmem:[%s1 + $0x10] sm:$0xff]
    %v24 = vld [vmem:[%s1 + $0x18] sm:$0xff]
    %v25 = vld [vmem:[%s1 + $0x20] sm:$0x1]
    %v26 = vld [vmem:[%s2] sm:$0xff]
    %v27 = vld [vmem:[%s2 + $0x8] sm:$0xff]
    %v28 = vld [vmem:[%s2 + $0x10] sm:$0xff]
    %v29 = vld [vmem:[%s2 + $0x18] sm:$0xff]
    %v30 = vld [vmem:[%s2 + $0x20] sm:$0x1]
    %v31 = vld [vmem:[%s3] sm:$0xff]
    %v32 = vld [vmem:[%s3 + $0x8] sm:$0xff]
    %v33 = vld [vmem:[%s3 + $0x10] sm:$0xff]
    %v34 = vld [vmem:[%s3 + $0x18] sm:$0xff]
    %v35 = vld [vmem:[%s3 + $0x20] sm:$0x1]
    %v36 = vld [vmem:[%s4] sm:$0xff]
    %v37 = vld [vmem:[%s4 + $0x8] sm:$0xff]
    %v38 = vld [vmem:[%s4 + $0x10] sm:$0xff]
    %v39 = vld [vmem:[%s4 + $0x18] sm:$0xff]
    %v40 = vld [vmem:[%s4 + $0x20] sm:$0x1]
    %v41 = vld [vmem:[%s0] sm:$0xff]
    %43 = vset.pattern.permute.xlu0 0
    %44 = vperm.xlu0 %43, %v26
    %v45 = vpop.permute.xlu0 %44
    %48 = vset.pattern.permute.xlu0 0
    %49 = vperm.xlu0 %48, %v27
    %v50 = vpop.permute.xlu0 %49
    %53 = vset.pattern.permute.xlu0 0
    %54 = vperm.xlu0 %53, %v28
    %v55 = vpop.permute.xlu0 %54
    %58 = vset.pattern.permute.xlu0 0
    %59 = vperm.xlu0 %58, %v29
    %v60 = vpop.permute.xlu0 %59
    %63 = vset.pattern.permute.xlu0 0
    %64 = vperm.xlu0 %63, %v30
    %v65 = vpop.permute.xlu0 %64
    %68 = vst [vmem:[#allocation1] ss:$2 sm:$0xff] %v41
    %v69 = vld.sshfl [vmem:[#allocation1] sm:$0xff pattern:$0x75316420]
    %v70 = vld.sshfl [vmem:[#allocation1 + $0x8] sm:$0xff pattern:$0x75316420]
    %vm71 = vcmask 31744
    %v73 = vsel %vm71, %v21, 0
    %v76 = vsel %vm71, %v22, 0
    %v79 = vsel %vm71, %v23, 0
    %v82 = vsel %vm71, %v24, 0
    %v85 = vsel %vm71, %v25, 0
    %vm87 = vcmask 1043456
    %v88 = vsel %vm87, %v69, 0
    %v90 = vsel %vm87, %v70, 0
    %92 = vmatpush.msra.mxu0 0.0
    %93 = vmatpush.msra.mxu0 0.0
    %94 = vmatpush.msra.mxu0 0.0
    %95 = vmatpush.msra.mxu0 0.0
    %96 = vmatpush.msra.mxu0 0.0
    %97 = vmatpush.msra.mxu0 0.0
    %98 = vmatpush.msra.mxu0 0.0
    %99 = vmatpush.msra.mxu0 0.0
    %100 = vmatpush.msra.mxu0 0.0
    %101 = vmatpush.msra.mxu0 0.0
    %102 = vmatpush.msra.mxu0 0.0
    %103 = vmatpush.msra.mxu0 0.0
    %104 = vmatpush.msra.mxu0 0.0
    %105 = vmatpush.msra.mxu0 0.0
    %106 = vmatpush.msra.mxu0 0.0
    %107 = vmatpush.msra.mxu0 %v88
    %108 = vmatmul.f32.gmra.mxu0 %v73
    %v109 = vpop.f32.mrf.mxu0
    %v110 = vadd.f32 %v45, %v109
    %111 = vmatmul.f32.gmra.mxu0 %v76
    %v112 = vpop.f32.mrf.mxu0
    %v113 = vadd.f32 %v50, %v112
    %114 = vmatmul.f32.gmra.mxu0 %v79
    %v115 = vpop.f32.mrf.mxu0
    %v116 = vadd.f32 %v55, %v115
    %117 = vmatmul.f32.gmra.mxu0 %v82
    %v118 = vpop.f32.mrf.mxu0
    %v119 = vadd.f32 %v60, %v118
    %120 = vmatmul.f32.gmra.mxu0 %v85
    %v121 = vpop.f32.mrf.mxu0
    %v122 = vadd.f32 %v65, %v121
    %123 = vdwg.mxu0
    %124 = vmatpush.msra.mxu0 0.0
    %125 = vmatpush.msra.mxu0 0.0
    %126 = vmatpush.msra.mxu0 0.0
    %127 = vmatpush.msra.mxu0 0.0
    %128 = vmatpush.msra.mxu0 0.0
    %129 = vmatpush.msra.mxu0 0.0
    %130 = vmatpush.msra.mxu0 0.0
    %131 = vmatpush.msra.mxu0 0.0
    %132 = vmatpush.msra.mxu0 0.0
    %133 = vmatpush.msra.mxu0 0.0
    %134 = vmatpush.msra.mxu0 0.0
    %135 = vmatpush.msra.mxu0 0.0
    %136 = vmatpush.msra.mxu0 0.0
    %137 = vmatpush.msra.mxu0 0.0
    %138 = vmatpush.msra.mxu0 0.0
    %139 = vmatpush.msra.mxu0 %v90
    %140 = vmatmul.f32.gmra.mxu0 %v73
    %v141 = vpop.f32.mrf.mxu0
    %v142 = vadd.f32 %v45, %v141
    %143 = vmatmul.f32.gmra.mxu0 %v76
    %v144 = vpop.f32.mrf.mxu0
    %v145 = vadd.f32 %v50, %v144
    %146 = vmatmul.f32.gmra.mxu0 %v79
    %v147 = vpop.f32.mrf.mxu0
    %v148 = vadd.f32 %v55, %v147
    %149 = vmatmul.f32.gmra.mxu0 %v82
    %v150 = vpop.f32.mrf.mxu0
    %v151 = vadd.f32 %v60, %v150
    %152 = vmatmul.f32.gmra.mxu0 %v85
    %v153 = vpop.f32.mrf.mxu0
    %v154 = vadd.f32 %v65, %v153
    %155 = vdwg.mxu0
    %v156 = vmax.f32 %v110, 0.0
    %v157 = vmax.f32 %v142, 0.0
    %v158 = vmax.f32 %v113, 0.0
    %v159 = vmax.f32 %v145, 0.0
    %v160 = vmax.f32 %v116, 0.0
    %v161 = vmax.f32 %v148, 0.0
    %v162 = vmax.f32 %v119, 0.0
    %v163 = vmax.f32 %v151, 0.0
    %v164 = vmax.f32 %v122, 0.0
    %v165 = vmax.f32 %v154, 0.0
    %vm166 = vcmask 269312
    %v168 = vsel %vm166, %v31, 0
    %v171 = vsel %vm166, %v32, 0
    %v174 = vsel %vm166, %v33, 0
    %v177 = vsel %vm166, %v34, 0
    %v180 = vsel %vm166, %v35, 0
    %vm182 = vcmask 1040384
    %v184 = vsel %vm182, %v164, 0
    %v187 = vsel %vm182, %v165, 0
    %189 = vmatpush.msra.mxu0 0.0
    %190 = vmatpush.msra.mxu0 0.0
    %191 = vmatpush.msra.mxu0 0.0
    %192 = vmatpush.msra.mxu0 0.0
    %193 = vmatpush.msra.mxu0 0.0
    %194 = vmatpush.msra.mxu0 0.0
    %195 = vmatpush.msra.mxu0 0.0
    %196 = vmatpush.msra.mxu0 0.0
    %197 = vmatpush.msra.mxu0 0.0
    %198 = vmatpush.msra.mxu0 0.0
    %199 = vmatpush.msra.mxu0 0.0
    %200 = vmatpush.msra.mxu0 %v184
    %201 = vmatpush.msra.mxu0 %v162
    %202 = vmatpush.msra.mxu0 %v160
    %203 = vmatpush.msra.mxu0 %v158
    %204 = vmatpush.msra.mxu0 %v156
    %205 = vmatmul.f32.gmra.mxu0 %v168
    %v206 = vpop.f32.mrf.mxu0
    %v207 = vadd.f32 0.0, %v206
    %208 = vmatmul.f32.gmra.mxu0 %v171
    %v209 = vpop.f32.mrf.mxu0
    %v210 = vadd.f32 0.0, %v209
    %211 = vmatmul.f32.gmra.mxu0 %v174
    %v212 = vpop.f32.mrf.mxu0
    %v213 = vadd.f32 0.0, %v212
    %214 = vmatmul.f32.gmra.mxu0 %v177
    %v215 = vpop.f32.mrf.mxu0
    %v216 = vadd.f32 0.0, %v215
    %217 = vmatmul.f32.gmra.mxu0 %v180
    %v218 = vpop.f32.mrf.mxu0
    %v219 = vadd.f32 0.0, %v218
    %220 = vdwg.mxu0
    %221 = vmatpush.msra.mxu0 0.0
    %222 = vmatpush.msra.mxu0 0.0
    %223 = vmatpush.msra.mxu0 0.0
    %224 = vmatpush.msra.mxu0 0.0
    %225 = vmatpush.msra.mxu0 0.0
    %226 = vmatpush.msra.mxu0 0.0
    %227 = vmatpush.msra.mxu0 0.0
    %228 = vmatpush.msra.mxu0 0.0
    %229 = vmatpush.msra.mxu0 0.0
    %230 = vmatpush.msra.mxu0 0.0
    %231 = vmatpush.msra.mxu0 0.0
    %232 = vmatpush.msra.mxu0 %v187
    %233 = vmatpush.msra.mxu0 %v163
    %234 = vmatpush.msra.mxu0 %v161
    %235 = vmatpush.msra.mxu0 %v159
    %236 = vmatpush.msra.mxu0 %v157
    %237 = vmatmul.f32.gmra.mxu0 %v168
    %v238 = vpop.f32.mrf.mxu0
    %v239 = vadd.f32 0.0, %v238
    %240 = vmatmul.f32.gmra.mxu0 %v171
    %v241 = vpop.f32.mrf.mxu0
    %v242 = vadd.f32 0.0, %v241
    %243 = vmatmul.f32.gmra.mxu0 %v174
    %v244 = vpop.f32.mrf.mxu0
    %v245 = vadd.f32 0.0, %v244
    %246 = vmatmul.f32.gmra.mxu0 %v177
    %v247 = vpop.f32.mrf.mxu0
    %v248 = vadd.f32 0.0, %v247
    %249 = vmatmul.f32.gmra.mxu0 %v180
    %v250 = vpop.f32.mrf.mxu0
    %v251 = vadd.f32 0.0, %v250
    %252 = vdwg.mxu0
    %v253 = vmax.f32 %v207, 0.0
    %v254 = vmax.f32 %v239, 0.0
    %v255 = vmax.f32 %v210, 0.0
    %v256 = vmax.f32 %v242, 0.0
    %v257 = vmax.f32 %v213, 0.0
    %v258 = vmax.f32 %v245, 0.0
    %v259 = vmax.f32 %v216, 0.0
    %v260 = vmax.f32 %v248, 0.0
    %v261 = vmax.f32 %v219, 0.0
    %v262 = vmax.f32 %v251, 0.0
    %264 = vset.pattern.permute.xlu0 0
    %265 = vperm.xlu0 %264, %v36
    %v266 = vpop.permute.xlu0 %265
    %269 = vset.pattern.permute.xlu0 0
    %270 = vperm.xlu0 %269, %v37
    %v271 = vpop.permute.xlu0 %270
    %274 = vset.pattern.permute.xlu0 0
    %275 = vperm.xlu0 %274, %v38
    %v276 = vpop.permute.xlu0 %275
    %279 = vset.pattern.permute.xlu0 0
    %280 = vperm.xlu0 %279, %v39
    %v281 = vpop.permute.xlu0 %280
    %284 = vset.pattern.permute.xlu0 0
    %285 = vperm.xlu0 %284, %v40
    %v286 = vpop.permute.xlu0 %285
    %v288 = vmul.f32 %v266, %v253
    %v289 = vmul.f32 %v266, %v254
    %v290 = vmul.f32 %v271, %v255
    %v291 = vmul.f32 %v271, %v256
    %v292 = vmul.f32 %v276, %v257
    %v293 = vmul.f32 %v276, %v258
    %v294 = vmul.f32 %v281, %v259
    %v295 = vmul.f32 %v281, %v260
    %v296 = vmul.f32 %v286, %v261
    %v297 = vmul.f32 %v286, %v262
    %v298 = vadd.f32 %v288, %v290
    %v299 = vadd.f32 %v298, %v292
    %v300 = vadd.f32 %v299, %v294
    %v301 = vsel %vm182, %v296, 0.0
    %v302 = vadd.f32 %v300, %v301
    %v303 = vrot.slane %v302, 4
    %v304 = vadd.f32 %v302, %v303
    %v305 = vrot.slane %v304, 2
    %v306 = vadd.f32 %v304, %v305
    %v307 = vrot.slane %v306, 1
    %v308 = vadd.f32 %v306, %v307
    %v309 = vadd.f32 %v289, %v291
    %v310 = vadd.f32 %v309, %v293
    %v311 = vadd.f32 %v310, %v295
    %v312 = vsel %vm182, %v297, 0.0
    %v313 = vadd.f32 %v311, %v312
    %v314 = vrot.slane %v313, 4
    %v315 = vadd.f32 %v313, %v314
    %v316 = vrot.slane %v315, 2
    %v317 = vadd.f32 %v315, %v316
    %v318 = vrot.slane %v317, 1
    %v319 = vadd.f32 %v317, %v318
    %v322 = vrot.slane %v319, 7
    %v323 = vsel %vm182, %v308, %v322
    %v325 = vlaneseq
    %vm326 = vcmp.ge.s32.totalorder %v325, 0
    %vm327 = vcmp.lt.s32.totalorder %v325, 256
    %vm328 = vmand %vm326, %vm327
    %329 = vst.msk [vmem:[#allocation2] sm:$0x3] %vm328, %v323
    // Predicated region
    $region22: #{tpu_custom_call.1} parent=1 // pred_check
      _
    $region23: #{tpu_custom_call.1} parent=1 // pred_check_branch
      %331 = sbr.rel (0) target = $region25
    $region24: #{tpu_custom_call.1} parent=1 // pred_region
      %333 = vsyncadd [#allocation3], 0
      %s335 = sshll.u32 [#allocation2], 4
      %s336 = int_to_ptr.vmem [resolvable:$true] %s335
      %s337 = sshll.u32 %s5, 4
      %s338 = int_to_ptr.hbm [resolvable:$true] %s337
      %340 = dma.vmem_to_hbm [thread:$0]  %s336, 32, %s338, [#allocation3]
    $region25: #{tpu_custom_call.1} parent=1 // pred_fallthru
      _
    // Predicated region
    $region26: #{tpu_custom_call.1} parent=1 // pred_check
      _
    $region27: #{tpu_custom_call.1} parent=1 // pred_check_branch
      %342 = sbr.rel (0) target = $region29
    $region28: #{tpu_custom_call.1} parent=1 // pred_region
      %344 = dma.done [#allocation3], 32
    $region29: #{tpu_custom_call.1} parent=1 // pred_fallthru
      _
    %345 = vsyncpa [#allocation3], 1

// kernel: tpu_custom_call.1
$region0: #{tpu_custom_call.1}
  #allocation0 [shape = 'u32[]', space=smem, size = 0x4, offset = 0x4, fixed_abs, tag = 'smem constant byte address 0x4 - core index']
  #allocation1 [shape = 'u32[72,128]{1,0:T(1,128)}', space=vmem, size = 0x9000, scoped, tag = 'internal scratch']
  %s0 = inlined_call_operand.vmem [shape: f32[4,256], index: 0, kind: input, shape index: {}]
  %s1 = inlined_call_operand.vmem [shape: f32[33,4], index: 1, kind: input, shape index: {}]
  %s2 = inlined_call_operand.vmem [shape: f32[33,1], index: 2, kind: input, shape index: {}]
  %s3 = inlined_call_operand.vmem [shape: f32[33,33], index: 3, kind: input, shape index: {}]
  %s4 = inlined_call_operand.vmem [shape: f32[33,1], index: 4, kind: input, shape index: {}]
  %s5 = inlined_call_operand.hbm [shape: f32[1,256], index: 5, kind: output, shape index: {}]
  %s6 = sld [smem:[#allocation0]]
  $region30: #{tpu_custom_call.1} parent=0
    _
  %s8 = ssub.s32 1, %s6
  %s9 = scalar_select 0, %s8, %s6
  $region1: #{tpu_custom_call.1} parent=0
    #allocation2 [shape = 'u8[1024]{0}', space=vmem, size = 0x400, scoped, tag = 'output window, operand 0, single buffered']
    #allocation3 [shape = 's32[1]{0}', space=sflag, size = 0x4, scoped, tag = 'scoped memory for tpu_custom_call.1']
    %10 = vsyncpa [#allocation3], 0
    // Predicated region
    $region2: #{tpu_custom_call.1} parent=1 // pred_check
      _
    $region3: #{tpu_custom_call.1} parent=1 // pred_check_branch
      %12 = sbr.rel (0) target = $region5
    $region4: #{tpu_custom_call.1} parent=1 // pred_region
      _
    $region5: #{tpu_custom_call.1} parent=1 // pred_fallthru
      _
    // Predicated region
    $region6: #{tpu_custom_call.1} parent=1 // pred_check
      _
    $region7: #{tpu_custom_call.1} parent=1 // pred_check_branch
      %14 = sbr.rel (0) target = $region9
    $region8: #{tpu_custom_call.1} parent=1 // pred_region
      _
    $region9: #{tpu_custom_call.1} parent=1 // pred_fallthru
      _
    // Predicated region
    $region10: #{tpu_custom_call.1} parent=1 // pred_check
      _
    $region11: #{tpu_custom_call.1} parent=1 // pred_check_branch
      %16 = sbr.rel (0) target = $region13
    $region12: #{tpu_custom_call.1} parent=1 // pred_region
      _
    $region13: #{tpu_custom_call.1} parent=1 // pred_fallthru
      _
    // Predicated region
    $region14: #{tpu_custom_call.1} parent=1 // pred_check
      _
    $region15: #{tpu_custom_call.1} parent=1 // pred_check_branch
      %18 = sbr.rel (0) target = $region17
    $region16: #{tpu_custom_call.1} parent=1 // pred_region
      _
    $region17: #{tpu_custom_call.1} parent=1 // pred_fallthru
      _
    // Predicated region
    $region18: #{tpu_custom_call.1} parent=1 // pred_check
      _
    $region19: #{tpu_custom_call.1} parent=1 // pred_check_branch
      %20 = sbr.rel (0) target = $region21
    $region20: #{tpu_custom_call.1} parent=1 // pred_region
      _
    $region21: #{tpu_custom_call.1} parent=1 // pred_fallthru
      _
    %v21 = vld [vmem:[%s1] sm:$0xff]
    %v22 = vld [vmem:[%s1 + $0x8] sm:$0xff]
    %v23 = vld [vmem:[%s1 + $0x10] sm:$0xff]
    %v24 = vld [vmem:[%s1 + $0x18] sm:$0xff]
    %v25 = vld [vmem:[%s1 + $0x20] sm:$0x1]
    %v26 = vld [vmem:[%s2] sm:$0xff]
    %v27 = vld [vmem:[%s2 + $0x8] sm:$0xff]
    %v28 = vld [vmem:[%s2 + $0x10] sm:$0xff]
    %v29 = vld [vmem:[%s2 + $0x18] sm:$0xff]
    %v30 = vld [vmem:[%s2 + $0x20] sm:$0x1]
    %v31 = vld [vmem:[%s3] sm:$0xff]
    %v32 = vld [vmem:[%s3 + $0x8] sm:$0xff]
    %v33 = vld [vmem:[%s3 + $0x10] sm:$0xff]
    %v34 = vld [vmem:[%s3 + $0x18] sm:$0xff]
    %v35 = vld [vmem:[%s3 + $0x20] sm:$0x1]
    %v36 = vld [vmem:[%s4] sm:$0xff]
    %v37 = vld [vmem:[%s4 + $0x8] sm:$0xff]
    %v38 = vld [vmem:[%s4 + $0x10] sm:$0xff]
    %v39 = vld [vmem:[%s4 + $0x18] sm:$0xff]
    %v40 = vld [vmem:[%s4 + $0x20] sm:$0x1]
    %v41 = vld [vmem:[%s0] sm:$0xff]
    %43 = vset.pattern.permute.xlu0 0
    %44 = vperm.xlu0 %43, %v26
    %v45 = vpop.permute.xlu0 %44
    %48 = vset.pattern.permute.xlu0 0
    %49 = vperm.xlu0 %48, %v27
    %v50 = vpop.permute.xlu0 %49
    %53 = vset.pattern.permute.xlu0 0
    %54 = vperm.xlu0 %53, %v28
    %v55 = vpop.permute.xlu0 %54
    %58 = vset.pattern.permute.xlu0 0
    %59 = vperm.xlu0 %58, %v29
    %v60 = vpop.permute.xlu0 %59
    %63 = vset.pattern.permute.xlu0 0
    %64 = vperm.xlu0 %63, %v30
    %v65 = vpop.permute.xlu0 %64
    %68 = vst [vmem:[#allocation1] ss:$2 sm:$0xff] %v41
    %v69 = vld.sshfl [vmem:[#allocation1] sm:$0xff pattern:$0x75316420]
    %v70 = vld.sshfl [vmem:[#allocation1 + $0x8] sm:$0xff pattern:$0x75316420]
    %vm71 = vcmask 31744
    %v73 = vsel %vm71, %v21, 0
    %v76 = vsel %vm71, %v22, 0
    %v79 = vsel %vm71, %v23, 0
    %v82 = vsel %vm71, %v24, 0
    %v85 = vsel %vm71, %v25, 0
    %vm87 = vcmask 1043456
    %v88 = vsel %vm87, %v69, 0
    %v90 = vsel %vm87, %v70, 0
    %92 = vmatpush.msra.mxu0 0.0
    %93 = vmatpush.msra.mxu0 0.0
    %94 = vmatpush.msra.mxu0 0.0
    %95 = vmatpush.msra.mxu0 0.0
    %96 = vmatpush.msra.mxu0 0.0
    %97 = vmatpush.msra.mxu0 0.0
    %98 = vmatpush.msra.mxu0 0.0
    %99 = vmatpush.msra.mxu0 0.0
    %100 = vmatpush.msra.mxu0 0.0
    %101 = vmatpush.msra.mxu0 0.0
    %102 = vmatpush.msra.mxu0 0.0
    %103 = vmatpush.msra.mxu0 0.0
    %104 = vmatpush.msra.mxu0 0.0
    %105 = vmatpush.msra.mxu0 0.0
    %106 = vmatpush.msra.mxu0 0.0
    %107 = vmatpush.msra.mxu0 %v88
    %108 = vmatmul.f32.gmra.mxu0 %v73
    %v109 = vpop.f32.mrf.mxu0
    %v110 = vadd.f32 %v45, %v109
    %111 = vmatmul.f32.gmra.mxu0 %v76
    %v112 = vpop.f32.mrf.mxu0
    %v113 = vadd.f32 %v50, %v112
    %114 = vmatmul.f32.gmra.mxu0 %v79
    %v115 = vpop.f32.mrf.mxu0
    %v116 = vadd.f32 %v55, %v115
    %117 = vmatmul.f32.gmra.mxu0 %v82
    %v118 = vpop.f32.mrf.mxu0
    %v119 = vadd.f32 %v60, %v118
    %120 = vmatmul.f32.gmra.mxu0 %v85
    %v121 = vpop.f32.mrf.mxu0
    %v122 = vadd.f32 %v65, %v121
    %123 = vdwg.mxu0
    %124 = vmatpush.msra.mxu0 0.0
    %125 = vmatpush.msra.mxu0 0.0
    %126 = vmatpush.msra.mxu0 0.0
    %127 = vmatpush.msra.mxu0 0.0
    %128 = vmatpush.msra.mxu0 0.0
    %129 = vmatpush.msra.mxu0 0.0
    %130 = vmatpush.msra.mxu0 0.0
    %131 = vmatpush.msra.mxu0 0.0
    %132 = vmatpush.msra.mxu0 0.0
    %133 = vmatpush.msra.mxu0 0.0
    %134 = vmatpush.msra.mxu0 0.0
    %135 = vmatpush.msra.mxu0 0.0
    %136 = vmatpush.msra.mxu0 0.0
    %137 = vmatpush.msra.mxu0 0.0
    %138 = vmatpush.msra.mxu0 0.0
    %139 = vmatpush.msra.mxu0 %v90
    %140 = vmatmul.f32.gmra.mxu0 %v73
    %v141 = vpop.f32.mrf.mxu0
    %v142 = vadd.f32 %v45, %v141
    %143 = vmatmul.f32.gmra.mxu0 %v76
    %v144 = vpop.f32.mrf.mxu0
    %v145 = vadd.f32 %v50, %v144
    %146 = vmatmul.f32.gmra.mxu0 %v79
    %v147 = vpop.f32.mrf.mxu0
    %v148 = vadd.f32 %v55, %v147
    %149 = vmatmul.f32.gmra.mxu0 %v82
    %v150 = vpop.f32.mrf.mxu0
    %v151 = vadd.f32 %v60, %v150
    %152 = vmatmul.f32.gmra.mxu0 %v85
    %v153 = vpop.f32.mrf.mxu0
    %v154 = vadd.f32 %v65, %v153
    %155 = vdwg.mxu0
    %v156 = vmax.f32 %v110, 0.0
    %v157 = vmax.f32 %v142, 0.0
    %v158 = vmax.f32 %v113, 0.0
    %v159 = vmax.f32 %v145, 0.0
    %v160 = vmax.f32 %v116, 0.0
    %v161 = vmax.f32 %v148, 0.0
    %v162 = vmax.f32 %v119, 0.0
    %v163 = vmax.f32 %v151, 0.0
    %v164 = vmax.f32 %v122, 0.0
    %v165 = vmax.f32 %v154, 0.0
    %vm166 = vcmask 269312
    %v168 = vsel %vm166, %v31, 0
    %v171 = vsel %vm166, %v32, 0
    %v174 = vsel %vm166, %v33, 0
    %v177 = vsel %vm166, %v34, 0
    %v180 = vsel %vm166, %v35, 0
    %vm182 = vcmask 1040384
    %v184 = vsel %vm182, %v164, 0
    %v187 = vsel %vm182, %v165, 0
    %189 = vmatpush.msra.mxu0 0.0
    %190 = vmatpush.msra.mxu0 0.0
    %191 = vmatpush.msra.mxu0 0.0
    %192 = vmatpush.msra.mxu0 0.0
    %193 = vmatpush.msra.mxu0 0.0
    %194 = vmatpush.msra.mxu0 0.0
    %195 = vmatpush.msra.mxu0 0.0
    %196 = vmatpush.msra.mxu0 0.0
    %197 = vmatpush.msra.mxu0 0.0
    %198 = vmatpush.msra.mxu0 0.0
    %199 = vmatpush.msra.mxu0 0.0
    %200 = vmatpush.msra.mxu0 %v184
    %201 = vmatpush.msra.mxu0 %v162
    %202 = vmatpush.msra.mxu0 %v160
    %203 = vmatpush.msra.mxu0 %v158
    %204 = vmatpush.msra.mxu0 %v156
    %205 = vmatmul.f32.gmra.mxu0 %v168
    %v206 = vpop.f32.mrf.mxu0
    %v207 = vadd.f32 0.0, %v206
    %208 = vmatmul.f32.gmra.mxu0 %v171
    %v209 = vpop.f32.mrf.mxu0
    %v210 = vadd.f32 0.0, %v209
    %211 = vmatmul.f32.gmra.mxu0 %v174
    %v212 = vpop.f32.mrf.mxu0
    %v213 = vadd.f32 0.0, %v212
    %214 = vmatmul.f32.gmra.mxu0 %v177
    %v215 = vpop.f32.mrf.mxu0
    %v216 = vadd.f32 0.0, %v215
    %217 = vmatmul.f32.gmra.mxu0 %v180
    %v218 = vpop.f32.mrf.mxu0
    %v219 = vadd.f32 0.0, %v218
    %220 = vdwg.mxu0
    %221 = vmatpush.msra.mxu0 0.0
    %222 = vmatpush.msra.mxu0 0.0
    %223 = vmatpush.msra.mxu0 0.0
    %224 = vmatpush.msra.mxu0 0.0
    %225 = vmatpush.msra.mxu0 0.0
    %226 = vmatpush.msra.mxu0 0.0
    %227 = vmatpush.msra.mxu0 0.0
    %228 = vmatpush.msra.mxu0 0.0
    %229 = vmatpush.msra.mxu0 0.0
    %230 = vmatpush.msra.mxu0 0.0
    %231 = vmatpush.msra.mxu0 0.0
    %232 = vmatpush.msra.mxu0 %v187
    %233 = vmatpush.msra.mxu0 %v163
    %234 = vmatpush.msra.mxu0 %v161
    %235 = vmatpush.msra.mxu0 %v159
    %236 = vmatpush.msra.mxu0 %v157
    %237 = vmatmul.f32.gmra.mxu0 %v168
    %v238 = vpop.f32.mrf.mxu0
    %v239 = vadd.f32 0.0, %v238
    %240 = vmatmul.f32.gmra.mxu0 %v171
    %v241 = vpop.f32.mrf.mxu0
    %v242 = vadd.f32 0.0, %v241
    %243 = vmatmul.f32.gmra.mxu0 %v174
    %v244 = vpop.f32.mrf.mxu0
    %v245 = vadd.f32 0.0, %v244
    %246 = vmatmul.f32.gmra.mxu0 %v177
    %v247 = vpop.f32.mrf.mxu0
    %v248 = vadd.f32 0.0, %v247
    %249 = vmatmul.f32.gmra.mxu0 %v180
    %v250 = vpop.f32.mrf.mxu0
    %v251 = vadd.f32 0.0, %v250
    %252 = vdwg.mxu0
    %v253 = vmax.f32 %v207, 0.0
    %v254 = vmax.f32 %v239, 0.0
    %v255 = vmax.f32 %v210, 0.0
    %v256 = vmax.f32 %v242, 0.0
    %v257 = vmax.f32 %v213, 0.0
    %v258 = vmax.f32 %v245, 0.0
    %v259 = vmax.f32 %v216, 0.0
    %v260 = vmax.f32 %v248, 0.0
    %v261 = vmax.f32 %v219, 0.0
    %v262 = vmax.f32 %v251, 0.0
    %264 = vset.pattern.permute.xlu0 0
    %265 = vperm.xlu0 %264, %v36
    %v266 = vpop.permute.xlu0 %265
    %269 = vset.pattern.permute.xlu0 0
    %270 = vperm.xlu0 %269, %v37
    %v271 = vpop.permute.xlu0 %270
    %274 = vset.pattern.permute.xlu0 0
    %275 = vperm.xlu0 %274, %v38
    %v276 = vpop.permute.xlu0 %275
    %279 = vset.pattern.permute.xlu0 0
    %280 = vperm.xlu0 %279, %v39
    %v281 = vpop.permute.xlu0 %280
    %284 = vset.pattern.permute.xlu0 0
    %285 = vperm.xlu0 %284, %v40
    %v286 = vpop.permute.xlu0 %285
    %v288 = vmul.f32 %v266, %v253
    %v289 = vmul.f32 %v266, %v254
    %v290 = vmul.f32 %v271, %v255
    %v291 = vmul.f32 %v271, %v256
    %v292 = vmul.f32 %v276, %v257
    %v293 = vmul.f32 %v276, %v258
    %v294 = vmul.f32 %v281, %v259
    %v295 = vmul.f32 %v281, %v260
    %v296 = vmul.f32 %v286, %v261
    %v297 = vmul.f32 %v286, %v262
    %v298 = vadd.f32 %v288, %v290
    %v299 = vadd.f32 %v298, %v292
    %v300 = vadd.f32 %v299, %v294
    %v301 = vsel %vm182, %v296, 0.0
    %v302 = vadd.f32 %v300, %v301
    %v303 = vrot.slane %v302, 4
    %v304 = vadd.f32 %v302, %v303
    %v305 = vrot.slane %v304, 2
    %v306 = vadd.f32 %v304, %v305
    %v307 = vrot.slane %v306, 1
    %v308 = vadd.f32 %v306, %v307
    %v309 = vadd.f32 %v289, %v291
    %v310 = vadd.f32 %v309, %v293
    %v311 = vadd.f32 %v310, %v295
    %v312 = vsel %vm182, %v297, 0.0
    %v313 = vadd.f32 %v311, %v312
    %v314 = vrot.slane %v313, 4
    %v315 = vadd.f32 %v313, %v314
    %v316 = vrot.slane %v315, 2
    %v317 = vadd.f32 %v315, %v316
    %v318 = vrot.slane %v317, 1
    %v319 = vadd.f32 %v317, %v318
    %v322 = vrot.slane %v319, 7
    %v323 = vsel %vm182, %v308, %v322
    %v325 = vlaneseq
    %vm326 = vcmp.ge.s32.totalorder %v325, 0
    %vm327 = vcmp.lt.s32.totalorder %v325, 256
    %vm328 = vmand %vm326, %vm327
    %329 = vst.msk [vmem:[#allocation2] sm:$0x3] %vm328, %v323
    // Predicated region
    $region22: #{tpu_custom_call.1} parent=1 // pred_check
      _
    $region23: #{tpu_custom_call.1} parent=1 // pred_check_branch
      %331 = sbr.rel (0) target = $region25
    $region24: #{tpu_custom_call.1} parent=1 // pred_region
      %333 = vsyncadd [#allocation3], 0
      %s335 = sshll.u32 [#allocation2], 4
      %s336 = int_to_ptr.vmem [resolvable:$true] %s335
      %s337 = sshll.u32 %s5, 4
      %s338 = int_to_ptr.hbm [resolvable:$true] %s337
      %340 = dma.vmem_to_hbm [thread:$0]  %s336, 32, %s338, [#allocation3]
    $region25: #{tpu_custom_call.1} parent=1 // pred_fallthru
      _
    // Predicated region
    $region26: #{tpu_custom_call.1} parent=1 // pred_check
      _
    $region27: #{tpu_custom_call.1} parent=1 // pred_check_branch
      %342 = sbr.rel (0) target = $region29
    $region28: #{tpu_custom_call.1} parent=1 // pred_region
      %344 = dma.done [#allocation3], 32
    $region29: #{tpu_custom_call.1} parent=1 // pred_fallthru
      _
    %345 = vsyncpa [#allocation3], 1

</llo_original>
